<compile_context>
chip_gen: v7x
topology: tpu7x:2x2x1
jax: 0.10.0
libtpu: 0.0.40
codegen_flags: <defaults>
</compile_context>

<pallas_src>
from functools import partial

import jax
import jax.numpy as jnp
from jax import lax
from jax.experimental import pallas as pl
from jax.experimental.pallas import tpu as pltpu

# ---- problem sizes (tiny MLP ensemble) --------------------------------------
B = 8        # batch
D_IN = 32    # input features
D_HID = 64   # modelA hidden/output features
D_OUT = 16   # modelB output features

_LANE = 128
_SUBLANE_F32 = 8
_SUBLANE_BF16 = 16


def _round_up(n, m):
    return ((n + m - 1) // m) * m


# ----------------------------- kernel ----------------------------------------
def _fused_mlp(x, w1, b1, w2, b2, out_dtype):
    # modelA: Linear + ReLU (f32 accumulate + f32 epilogue)
    h = jnp.dot(x, w1, preferred_element_type=jnp.float32)
    h = jnp.maximum(h + b1, 0.0)
    # modelB: Linear (activations cast to the MXU dtype, f32 accumulate)
    y = jnp.dot(h.astype(w2.dtype), w2, preferred_element_type=jnp.float32)
    return (y + b2).astype(out_dtype)


def ensemble_kernel(x_ref, w1_ref, b1_ref, w2_ref, b2_ref, o_ref, *,
                    sub_rows=256):
    rows = x_ref.shape[0]
    w1 = w1_ref[...]
    b1 = b1_ref[...]
    w2 = w2_ref[...]
    b2 = b2_ref[...]
    if rows <= sub_rows or rows % sub_rows != 0:
        # Small / non-divisible tile: single fused pass.
        o_ref[...] = _fused_mlp(x_ref[...], w1, b1, w2, b2, o_ref.dtype)
    else:
        # Large tile: sub-tile the batch so the f32 intermediate h stays
        # small between the two matmuls (bounds vreg/VMEM live ranges).
        n_sub = rows // sub_rows

        def body(i, carry):
            r0 = pl.multiple_of(i * sub_rows, sub_rows)
            xs = x_ref[pl.ds(r0, sub_rows), :]
            o_ref[pl.ds(r0, sub_rows), :] = _fused_mlp(
                xs, w1, b1, w2, b2, o_ref.dtype)
            return carry

        lax.fori_loop(0, n_sub, body, 0, unroll=True)


# --------------------------- parameter prep ----------------------------------
def prepare_ensemble_params(w1, b1, w2, b2, *, use_bf16_matmul=True):
    """Pad the hidden (lane) dim once and cast weights to the MXU dtype.

    Call once at module init; the padded params are reused every forward.
      w1 : (D_in, D_hid)   b1 : (1, D_hid) or (D_hid,)
      w2 : (D_hid, D_out)  b2 : (1, D_out) or (D_out,)
    """
    D_in, D_hid = w1.shape
    D_out = w2.shape[1]
    Hp = _round_up(D_hid, _LANE)
    mm_dtype = jnp.bfloat16 if use_bf16_matmul else jnp.float32

    w1p = jnp.pad(w1, ((0, 0), (0, Hp - D_hid))).astype(mm_dtype)        # (D_in, Hp)
    b1p = jnp.pad(b1.reshape(1, -1),
                  ((0, 0), (0, Hp - D_hid))).astype(jnp.float32)         # (1, Hp)
    w2p = jnp.pad(w2, ((0, Hp - D_hid), (0, 0))).astype(mm_dtype)        # (Hp, D_out)
    b2p = b2.reshape(1, -1).astype(jnp.float32)                          # (1, D_out)
    return w1p, b1p, w2p, b2p


# ------------------------------ forward --------------------------------------
@partial(jax.jit, static_argnames=("batch_tile", "gridless_max_rows"))
def my_ensemble_forward(x, w1p, b1p, w2p, b2p, *,
                        batch_tile=1024, gridless_max_rows=256):
    """Fused MyEnsemble forward. Params must come from prepare_ensemble_params."""
    B_, D_in = x.shape
    Hp = w1p.shape[1]
    D_out = w2p.shape[1]
    mm_dtype = w1p.dtype
    row_align = _SUBLANE_BF16 if mm_dtype == jnp.bfloat16 else _SUBLANE_F32
    assert batch_tile % row_align == 0

    itemsize = jnp.dtype(mm_dtype).itemsize
    cost = pl.CostEstimate(
        flops=2 * B_ * (D_in * Hp + Hp * D_out),
        transcendentals=0,
        bytes_accessed=(B_ * D_in * itemsize
                        + (w1p.size + w2p.size) * itemsize
                        + (b1p.size + b2p.size) * 4
                        + B_ * D_out * 4),
    )
    out_dtype = jnp.float32

    if B_ <= gridless_max_rows:
        # Small batch: one whole-array VMEM block, no grid loop.
        Bp = _round_up(max(B_, row_align), row_align)
        xp = jnp.pad(x, ((0, Bp - B_), (0, 0))).astype(mm_dtype)
        vmem = pltpu.MemorySpace.VMEM
        out_p = pl.pallas_call(
            ensemble_kernel,
            out_shape=jax.ShapeDtypeStruct((Bp, D_out), out_dtype),
            in_specs=[pl.BlockSpec(memory_space=vmem)] * 5,
            out_specs=pl.BlockSpec(memory_space=vmem),
            cost_estimate=cost,
        )(xp, w1p, b1p, w2p, b2p)
    else:
        # Batch-tiled grid; >= 2 "parallel" steps so both v7x TCs get work.
        tile = min(batch_tile, _round_up(pl.cdiv(B_, 2), row_align))
        Bp = pl.cdiv(B_, tile) * tile
        xp = jnp.pad(x, ((0, Bp - B_), (0, 0))).astype(mm_dtype)
        out_p = pl.pallas_call(
            ensemble_kernel,
            out_shape=jax.ShapeDtypeStruct((Bp, D_out), out_dtype),
            grid=(Bp // tile,),
            in_specs=[
                pl.BlockSpec((tile, D_in), lambda i: (i, 0)),   # x (K unpadded)
                pl.BlockSpec((D_in, Hp), lambda i: (0, 0)),     # w1, VMEM-resident
                pl.BlockSpec((1, Hp), lambda i: (0, 0)),        # b1
                pl.BlockSpec((Hp, D_out), lambda i: (0, 0)),    # w2
                pl.BlockSpec((1, D_out), lambda i: (0, 0)),     # b2
            ],
            out_specs=pl.BlockSpec((tile, D_out), lambda i: (i, 0)),
            compiler_params=pltpu.CompilerParams(
                dimension_semantics=("parallel",)),
            cost_estimate=cost,
        )(xp, w1p, b1p, w2p, b2p)

    # Padded batch rows hold relu(b1) @ w2 + b2 garbage; slice them off here
    # (fused by jit). Do NOT remove this slice if the output is consumed padded.
    return out_p[:B_, :].astype(x.dtype)


def reference_forward(x, w1, b1, w2, b2):
    """Pure-JAX reference (semantically identical to the PyTorch module)."""
    h = jnp.maximum(x @ w1 + b1, 0.0)   # modelA
    return h @ w2 + b2                  # modelB


if __name__ == "__main__":
    key = jax.random.PRNGKey(0)
    kx, k1, kb1, k2, kb2, kx2 = jax.random.split(key, 6)

    x = jax.random.normal(kx, (B, D_IN), dtype=jnp.float32)
    w1 = jax.random.normal(k1, (D_IN, D_HID), dtype=jnp.float32) * 0.1
    b1 = jax.random.normal(kb1, (1, D_HID), dtype=jnp.float32) * 0.1
    w2 = jax.random.normal(k2, (D_HID, D_OUT), dtype=jnp.float32) * 0.1
    b2 = jax.random.normal(kb2, (1, D_OUT), dtype=jnp.float32) * 0.1

    ref = reference_forward(x, w1, b1, w2, b2)

    # Params padded/cast once (module init), reused across forward calls.
    params_bf16 = prepare_ensemble_params(w1, b1, w2, b2, use_bf16_matmul=True)
    params_f32 = prepare_ensemble_params(w1, b1, w2, b2, use_bf16_matmul=False)

    # 1) Default path: bf16 MXU inputs, f32 epilogue, gridless small batch.
    out_bf16 = jax.block_until_ready(my_ensemble_forward(x, *params_bf16))
    assert out_bf16.shape == (B, D_OUT), out_bf16.shape
    assert jnp.allclose(out_bf16, ref, atol=5e-2, rtol=5e-2), "bf16 mismatch"

    # 2) f32 MXU path (tight correctness check).
    out_f32 = jax.block_until_ready(my_ensemble_forward(x, *params_f32))
    assert jnp.allclose(out_f32, ref, atol=1e-5, rtol=1e-5), "f32 mismatch"

    # 3) Batch-tiled grid path (>= 2 parallel steps, weights VMEM-resident).
    xb = jax.random.normal(kx2, (160, D_IN), dtype=jnp.float32)
    ref_b = reference_forward(xb, w1, b1, w2, b2)
    out_b = jax.block_until_ready(
        my_ensemble_forward(xb, *params_f32, gridless_max_rows=64))
    assert out_b.shape == (160, D_OUT), out_b.shape
    assert jnp.allclose(out_b, ref_b, atol=1e-5, rtol=1e-5), "tiled mismatch"

    out_b16 = jax.block_until_ready(
        my_ensemble_forward(xb, *params_bf16, gridless_max_rows=64))
    assert jnp.allclose(out_b16, ref_b, atol=5e-2, rtol=5e-2), "tiled bf16 mismatch"

    print("KERNEL_OK")
</pallas_src>

<mosaic_0001>
module attributes {stable_mosaic.version = 11 : i64} {
  func.func @ensemble_kernel(%arg0: memref<16x32xbf16, #tpu.memory_space<vmem>>, %arg1: memref<32x128xbf16, #tpu.memory_space<vmem>>, %arg2: memref<1x128xf32, #tpu.memory_space<vmem>>, %arg3: memref<128x16xbf16, #tpu.memory_space<vmem>>, %arg4: memref<1x16xf32, #tpu.memory_space<vmem>>, %arg5: memref<16x16xf32, #tpu.memory_space<vmem>>) attributes {dimension_semantics = [], scalar_prefetch = 0 : i64, scratch_operands = 0 : i64, tpu.core_type = #tpu.core_type<tc>} {
    %c0 = arith.constant 0 : index
    %c0_0 = arith.constant 0 : index
    %0 = vector.load %arg1[%c0, %c0_0] : memref<32x128xbf16, #tpu.memory_space<vmem>>, vector<32x128xbf16>
    %c0_1 = arith.constant 0 : index
    %c0_2 = arith.constant 0 : index
    %1 = vector.load %arg2[%c0_1, %c0_2] : memref<1x128xf32, #tpu.memory_space<vmem>>, vector<1x128xf32>
    %c0_3 = arith.constant 0 : index
    %c0_4 = arith.constant 0 : index
    %2 = vector.load %arg3[%c0_3, %c0_4] : memref<128x16xbf16, #tpu.memory_space<vmem>>, vector<128x16xbf16>
    %c0_5 = arith.constant 0 : index
    %c0_6 = arith.constant 0 : index
    %3 = vector.load %arg4[%c0_5, %c0_6] : memref<1x16xf32, #tpu.memory_space<vmem>>, vector<1x16xf32>
    %c0_7 = arith.constant 0 : index
    %c0_8 = arith.constant 0 : index
    %4 = vector.load %arg0[%c0_7, %c0_8] : memref<16x32xbf16, #tpu.memory_space<vmem>>, vector<16x32xbf16>
    %cst = arith.constant dense<0.000000e+00> : vector<16x128xf32>
    %5 = tpu.matmul %4, %0, %cst {dimension_numbers = #tpu.dot_dimension_numbers<[1], [0], [0], [1], [0, 0, 1, 1], [], []>} : vector<16x32xbf16>, vector<32x128xbf16>, vector<16x128xf32> -> vector<16x128xf32>
    %6 = vector.broadcast %1 : vector<1x128xf32> to vector<16x128xf32>
    %7 = arith.addf %5, %6 : vector<16x128xf32>
    %cst_9 = arith.constant 0.000000e+00 : f32
    %8 = vector.broadcast %cst_9 : f32 to vector<16x128xf32>
    %9 = arith.maximumf %7, %8 : vector<16x128xf32>
    %10 = arith.truncf %9 : vector<16x128xf32> to vector<16x128xbf16>
    %cst_10 = arith.constant dense<0.000000e+00> : vector<16x16xf32>
    %11 = tpu.matmul %10, %2, %cst_10 {dimension_numbers = #tpu.dot_dimension_numbers<[1], [0], [0], [1], [0, 0, 1, 1], [], []>} : vector<16x128xbf16>, vector<128x16xbf16>, vector<16x16xf32> -> vector<16x16xf32>
    %12 = vector.broadcast %3 : vector<1x16xf32> to vector<16x16xf32>
    %13 = arith.addf %11, %12 : vector<16x16xf32>
    %c0_11 = arith.constant 0 : index
    %c0_12 = arith.constant 0 : index
    %14 = vector.load %arg5[%c0_11, %c0_12] : memref<16x16xf32, #tpu.memory_space<vmem>>, vector<16x16xf32>
    tpu.vector_store %arg5[%c0_11, %c0_12], %13 {strides = array<i32>} : memref<16x16xf32, #tpu.memory_space<vmem>>, vector<16x16xf32>,
    return
  }
}

</mosaic_0001>

<llo_original>
// kernel: my_ensemble_forward.1
$region0: #{my_ensemble_forward.1}
  #allocation0 [shape = 'u32[]', space=smem, size = 0x4, offset = 0x4, fixed_abs, tag = 'smem constant byte address 0x4 - core index']
  #allocation1 [shape = 'u32[144,128]{1,0:T(1,128)}', space=vmem, size = 0x12000, scoped, tag = 'internal scratch']
  %s0 = inlined_call_operand.vmem [shape: bf16[16,32], index: 0, kind: input, shape index: {}]
  %s1 = inlined_call_operand.vmem [shape: bf16[32,128], index: 1, kind: input, shape index: {}]
  %s2 = inlined_call_operand.vmem [shape: f32[1,128], index: 2, kind: input, shape index: {}]
  %s3 = inlined_call_operand.vmem [shape: bf16[128,16], index: 3, kind: input, shape index: {}]
  %s4 = inlined_call_operand.vmem [shape: f32[1,16], index: 4, kind: input, shape index: {}]
  %s5 = inlined_call_operand.vmem [shape: f32[16,16], index: 5, kind: output, shape index: {}]
  %s6 = sld [smem:[#allocation0]]
  $region30: #{my_ensemble_forward.1} parent=0
    _
  %s8 = ssub.s32 1, %s6
  %s9 = scalar_select 0, %s8, %s6
  // Predicated region
  $region2: #{my_ensemble_forward.1} parent=0 // pred_check
    _
  $region3: #{my_ensemble_forward.1} parent=0 // pred_check_branch
    %11 = sbr.rel (0) target = $region5
  $region4: #{my_ensemble_forward.1} parent=0 // pred_region
    _
  $region5: #{my_ensemble_forward.1} parent=0 // pred_fallthru
    _
  // Predicated region
  $region6: #{my_ensemble_forward.1} parent=0 // pred_check
    _
  $region7: #{my_ensemble_forward.1} parent=0 // pred_check_branch
    %13 = sbr.rel (0) target = $region9
  $region8: #{my_ensemble_forward.1} parent=0 // pred_region
    _
  $region9: #{my_ensemble_forward.1} parent=0 // pred_fallthru
    _
  // Predicated region
  $region10: #{my_ensemble_forward.1} parent=0 // pred_check
    _
  $region11: #{my_ensemble_forward.1} parent=0 // pred_check_branch
    %15 = sbr.rel (0) target = $region13
  $region12: #{my_ensemble_forward.1} parent=0 // pred_region
    _
  $region13: #{my_ensemble_forward.1} parent=0 // pred_fallthru
    _
  // Predicated region
  $region14: #{my_ensemble_forward.1} parent=0 // pred_check
    _
  $region15: #{my_ensemble_forward.1} parent=0 // pred_check_branch
    %17 = sbr.rel (0) target = $region17
  $region16: #{my_ensemble_forward.1} parent=0 // pred_region
    _
  $region17: #{my_ensemble_forward.1} parent=0 // pred_fallthru
    _
  // Predicated region
  $region18: #{my_ensemble_forward.1} parent=0 // pred_check
    _
  $region19: #{my_ensemble_forward.1} parent=0 // pred_check_branch
    %19 = sbr.rel (0) target = $region21
  $region20: #{my_ensemble_forward.1} parent=0 // pred_region
    _
  $region21: #{my_ensemble_forward.1} parent=0 // pred_fallthru
    _
  %v21 = vld [vmem:[%s1] sm:$0xf]
  %v22 = vld [vmem:[%s1 + $0x4] sm:$0xf]
  %v23 = vld [vmem:[%s1 + $0x8] sm:$0xf]
  %v24 = vld [vmem:[%s1 + $0xc] sm:$0xf]
  %v25 = vld [vmem:[%s2] sm:$0x1]
  %v26 = vld [vmem:[%s3] sm:$0xf]
  %v27 = vld [vmem:[%s3 + $0x4] sm:$0xf]
  %v28 = vld [vmem:[%s3 + $0x8] sm:$0xf]
  %v29 = vld [vmem:[%s3 + $0xc] sm:$0xf]
  %v30 = vld [vmem:[%s3 + $0x10] sm:$0xf]
  %v31 = vld [vmem:[%s3 + $0x14] sm:$0xf]
  %v32 = vld [vmem:[%s3 + $0x18] sm:$0xf]
  %v33 = vld [vmem:[%s3 + $0x1c] sm:$0xf]
  %v34 = vld [vmem:[%s3 + $0x20] sm:$0xf]
  %v35 = vld [vmem:[%s3 + $0x24] sm:$0xf]
  %v36 = vld [vmem:[%s3 + $0x28] sm:$0xf]
  %v37 = vld [vmem:[%s3 + $0x2c] sm:$0xf]
  %v38 = vld [vmem:[%s3 + $0x30] sm:$0xf]
  %v39 = vld [vmem:[%s3 + $0x34] sm:$0xf]
  %v40 = vld [vmem:[%s3 + $0x38] sm:$0xf]
  %v41 = vld [vmem:[%s3 + $0x3c] sm:$0xf]
  %v42 = vld [vmem:[%s4] sm:$0x1]
  %v43 = vld [vmem:[%s0] sm:$0xf]
  %v44 = vld [vmem:[%s0 + $0x4] sm:$0xf]
  %v46 = vlaneseq
  %v47 = vshrl.u32 %v46, 7
  %v48 = vsub.s32 0, %v47
  %v49 = vrot.slane %v25, %v48
  %v53 = vunpack.c.l.b16 %v43
  %v54 = vunpack.c.l.b16 %v44
  %v55 = vpack.c.b16 %v54, %v53
  %v60 = vunpack.c.l.b16 %v21
  %v61 = vunpack.c.l.b16 %v22
  %v62 = vunpack.c.l.b16 %v23
  %v63 = vunpack.c.l.b16 %v24
  %v64 = vpack.c.b16 %v61, %v60
  %v65 = vpack.c.b16 %v63, %v62
  %vm68 = vcmask 261120
  %v70 = vsel %vm68, %v55, 0
  %72 = vmatprep.subr.bf16.mxu0 0
  %73 = vmatpush1.bf16.msra.mxu0 %v64
  %74 = vmatprep.subr.bf16.mxu0 0
  %75 = vmatpush1.bf16.msra.mxu0 %v65
  %76 = vmatprep.subr.bf16.mxu0 0
  %77 = vmatpush1.bf16.msra.mxu0 0
  %78 = vmatprep.subr.bf16.mxu0 0
  %79 = vmatpush1.bf16.msra.mxu0 0
  %80 = vmatprep.subr.bf16.mxu0 0
  %81 = vmatpush1.bf16.msra.mxu0 0
  %82 = vmatprep.subr.bf16.mxu0 0
  %83 = vmatpush1.bf16.msra.mxu0 0
  %84 = vmatprep.subr.bf16.mxu0 0
  %85 = vmatpush1.bf16.msra.mxu0 0
  %86 = vmatprep.subr.bf16.mxu0 0
  %87 = vmatpush1.bf16.msra.mxu0 0
  %88 = vmatprep.subr.bf16.mxu0 0
  %89 = vmatpush1.bf16.msra.mxu0 0
  %90 = vmatprep.subr.bf16.mxu0 0
  %91 = vmatpush1.bf16.msra.mxu0 0
  %92 = vmatprep.subr.bf16.mxu0 0
  %93 = vmatpush1.bf16.msra.mxu0 0
  %94 = vmatprep.subr.bf16.mxu0 0
  %95 = vmatpush1.bf16.msra.mxu0 0
  %96 = vmatprep.subr.bf16.mxu0 0
  %97 = vmatpush1.bf16.msra.mxu0 0
  %98 = vmatprep.subr.bf16.mxu0 0
  %99 = vmatpush1.bf16.msra.mxu0 0
  %100 = vmatprep.subr.bf16.mxu0 0
  %101 = vmatpush1.bf16.msra.mxu0 0
  %102 = vmatprep.subr.bf16.mxu0 0
  %103 = vmatpush1.bf16.msra.mxu0 0
  %104 = vmatprep.mubr.bf16.mxu0 0
  %105 = vmatmul.mubr.bf16.gmra.mrb[0].mxu0 %v70
  %v106 = vpop.f32.mrb[0].mxu0
  %v107 = vadd.f32 %v49, %v106
  %v108 = vpop.f32.mrb[0].mxu0
  %v109 = vpop.f32.mrb[0].mxu0
  %v110 = vadd.f32 %v49, %v109
  %v111 = vpop.f32.mrb[0].mxu0
  %112 = vdwg.mxu0
  %v113 = vmax.f32 %v107, 0.0
  %v114 = vmax.f32 %v110, 0.0
  %v115 = vpack.c.bf16 %v114, %v113
  %v117 = vlaneseq
  %v118 = vshrl.u32 %v117, 7
  %v119 = vsub.s32 0, %v118
  %v120 = vrot.slane %v42, %v119
  %v138 = vunpack.c.l.b16 %v26
  %v139 = vunpack.c.l.b16 %v27
  %v140 = vunpack.c.l.b16 %v28
  %v141 = vunpack.c.l.b16 %v29
  %v142 = vunpack.c.l.b16 %v30
  %v143 = vunpack.c.l.b16 %v31
  %v144 = vunpack.c.l.b16 %v32
  %v145 = vunpack.c.l.b16 %v33
  %v146 = vunpack.c.l.b16 %v34
  %v147 = vunpack.c.l.b16 %v35
  %v148 = vunpack.c.l.b16 %v36
  %v149 = vunpack.c.l.b16 %v37
  %v150 = vunpack.c.l.b16 %v38
  %v151 = vunpack.c.l.b16 %v39
  %v152 = vunpack.c.l.b16 %v40
  %v153 = vunpack.c.l.b16 %v41
  %v154 = vpack.c.b16 %v139, %v138
  %v155 = vpack.c.b16 %v141, %v140
  %v156 = vpack.c.b16 %v143, %v142
  %v157 = vpack.c.b16 %v145, %v144
  %v158 = vpack.c.b16 %v147, %v146
  %v159 = vpack.c.b16 %v149, %v148
  %v160 = vpack.c.b16 %v151, %v150
  %v161 = vpack.c.b16 %v153, %v152
  %170 = vmatprep.subr.bf16.mxu0 0
  %171 = vmatpush1.bf16.msra.mxu0 %v154
  %172 = vmatprep.subr.bf16.mxu0 0
  %173 = vmatpush1.bf16.msra.mxu0 %v155
  %174 = vmatprep.subr.bf16.mxu0 0
  %175 = vmatpush1.bf16.msra.mxu0 %v156
  %176 = vmatprep.subr.bf16.mxu0 0
  %177 = vmatpush1.bf16.msra.mxu0 %v157
  %178 = vmatprep.subr.bf16.mxu0 0
  %179 = vmatpush1.bf16.msra.mxu0 %v158
  %180 = vmatprep.subr.bf16.mxu0 0
  %181 = vmatpush1.bf16.msra.mxu0 %v159
  %182 = vmatprep.subr.bf16.mxu0 0
  %183 = vmatpush1.bf16.msra.mxu0 %v160
  %184 = vmatprep.subr.bf16.mxu0 0
  %185 = vmatpush1.bf16.msra.mxu0 %v161
  %186 = vmatprep.subr.bf16.mxu0 0
  %187 = vmatpush1.bf16.msra.mxu0 0
  %188 = vmatprep.subr.bf16.mxu0 0
  %189 = vmatpush1.bf16.msra.mxu0 0
  %190 = vmatprep.subr.bf16.mxu0 0
  %191 = vmatpush1.bf16.msra.mxu0 0
  %192 = vmatprep.subr.bf16.mxu0 0
  %193 = vmatpush1.bf16.msra.mxu0 0
  %194 = vmatprep.subr.bf16.mxu0 0
  %195 = vmatpush1.bf16.msra.mxu0 0
  %196 = vmatprep.subr.bf16.mxu0 0
  %197 = vmatpush1.bf16.msra.mxu0 0
  %198 = vmatprep.subr.bf16.mxu0 0
  %199 = vmatpush1.bf16.msra.mxu0 0
  %200 = vmatprep.subr.bf16.mxu0 0
  %201 = vmatpush1.bf16.msra.mxu0 0
  %202 = vmatprep.mubr.bf16.mxu0 0
  %203 = vmatmul.mubr.bf16.gmra.mrb[0].mxu0 %v115
  %v204 = vpop.f32.mrb[0].mxu0
  %v205 = vadd.f32 %v120, %v204
  %v206 = vpop.f32.mrb[0].mxu0
  %v207 = vpop.f32.mrb[0].mxu0
  %v208 = vadd.f32 %v120, %v207
  %v209 = vpop.f32.mrb[0].mxu0
  %210 = vdwg.mxu0
  %vm211 = vcmask 130048
  %212 = vst.msk [vmem:[%s5] sm:$0xff] %vm211, %v205
  %213 = vst.msk [vmem:[%s5 + $0x8] sm:$0xff] %vm211, %v208
  // Predicated region
  $region22: #{my_ensemble_forward.1} parent=0 // pred_check
    _
  $region23: #{my_ensemble_forward.1} parent=0 // pred_check_branch
    %215 = sbr.rel (0) target = $region25
  $region24: #{my_ensemble_forward.1} parent=0 // pred_region
    _
  $region25: #{my_ensemble_forward.1} parent=0 // pred_fallthru
    _
  // Predicated region
  $region26: #{my_ensemble_forward.1} parent=0 // pred_check
    _
  $region27: #{my_ensemble_forward.1} parent=0 // pred_check_branch
    %217 = sbr.rel (0) target = $region29
  $region28: #{my_ensemble_forward.1} parent=0 // pred_region
    _
  $region29: #{my_ensemble_forward.1} parent=0 // pred_fallthru
    _

</llo_original>
